<compile_context>
chip_gen: v7x
topology: tpu7x:2x2x1
jax: 0.10.0
libtpu: 0.0.40
codegen_flags: <defaults>
</compile_context>

<pallas_src>
import jax
import jax.numpy as jnp
from jax.experimental import pallas as pl
from jax.experimental.pallas import tpu as pltpu

LANE = 128  # lane width: padding target for the (VMEM-resident) weights only


def _round_up(n, m):
    return -(-n // m) * m


def output_net_kernel(x_ref, w1_ref, b1_ref, w2_ref, b2_ref, w3_ref, b3_ref,
                      y_ref):
    """One batch tile of the fused 3-layer MLP."""
    cdt = w1_ref.dtype                       # matmul input dtype (f32 or bf16)

    x = x_ref[...].astype(cdt)               # (TB, D); no-op if x already cdt

    # Layer 1: input2hidden -> tanh  (f32 accumulate, f32 bias-add + tanh)
    h1 = jnp.dot(x, w1_ref[...], preferred_element_type=jnp.float32)
    h1 = jnp.tanh(h1 + b1_ref[...])                              # (TB, H2p)

    # Layer 2: hidden2hidden -> tanh
    h2 = jnp.dot(h1.astype(cdt), w2_ref[...],
                 preferred_element_type=jnp.float32)
    h2 = jnp.tanh(h2 + b2_ref[...])                              # (TB, Hp)

    # Layer 3: hidden2label (no activation); narrow (TB, C) writeback —
    # the handful of masked stores is negligible vs. 32x padded HBM traffic.
    y = jnp.dot(h2.astype(cdt), w3_ref[...],
                preferred_element_type=jnp.float32)
    y_ref[...] = (y + b3_ref[...]).astype(y_ref.dtype)           # (TB, C)


def prepare_params(params, *, matmul_dtype=jnp.float32):
    """One-time weight prep (hoisted out of the per-call path).

    Pads the hidden feature dims to 128 lanes (zero cols/rows stay exact zeros
    through tanh, so results are bit-identical) and optionally pre-casts the
    matmul weights to bf16.  Call once and reuse the result for every forward.
    """
    w1, b1 = params["w1"], params["b1"]
    w2, b2 = params["w2"], params["b2"]
    w3, b3 = params["w3"], params["b3"]

    D, H2 = w1.shape
    H = w2.shape[1]
    C = w3.shape[1]
    H2p = _round_up(H2, LANE)
    Hp = _round_up(H, LANE)

    def pad2(a, rows, cols, dtype):
        return jnp.pad(a, ((0, rows - a.shape[0]),
                           (0, cols - a.shape[1]))).astype(dtype)

    return {
        "w1": pad2(w1, D, H2p, matmul_dtype),    # (D,   H2p) — input dim unpadded
        "b1": pad2(b1, 1, H2p, jnp.float32),     # (1,   H2p)
        "w2": pad2(w2, H2p, Hp, matmul_dtype),   # (H2p, Hp)
        "b2": pad2(b2, 1, Hp, jnp.float32),      # (1,   Hp)
        "w3": pad2(w3, Hp, C, matmul_dtype),     # (Hp,  C)  — output dim unpadded
        "b3": b3.astype(jnp.float32),            # (1,   C)
    }


def output_net_1(x, prepared, *, batch_tile=1024, target_grid_steps=4):
    """Forward pass of Output_net_1.

    x:        (batch, input_size), float32 or bfloat16 (bf16 halves the
              dominant HBM stream when the prepared weights are bf16).
    prepared: output of prepare_params(params, matmul_dtype=...).
    """
    w1p, b1p = prepared["w1"], prepared["b1"]
    w2p, b2p = prepared["w2"], prepared["b2"]
    w3p, b3p = prepared["w3"], prepared["b3"]

    B, D = x.shape
    assert w1p.shape[0] == D
    H2p = w1p.shape[1]
    Hp = w2p.shape[1]
    C = w3p.shape[1]

    # Batch tiling: pad B only to the sublane multiple (8); Pallas masks the
    # ragged last tile.  Cap TB so the grid has >= target_grid_steps steps
    # when possible -> the "parallel" axis shards across v7x's 2 TensorCores.
    Bp = _round_up(B, 8)
    TB = min(batch_tile, max(8, _round_up(pl.cdiv(Bp, target_grid_steps), 8)))
    grid = (pl.cdiv(Bp, TB),)

    xp = x if Bp == B else jnp.pad(x, ((0, Bp - B), (0, 0)))

    # Weights / biases: same block index every grid step -> VMEM-resident
    # (fetched once, never re-DMA'd).
    def resident(a):
        return pl.BlockSpec(a.shape, lambda i: (0, 0))

    weight_bytes = sum(int(a.size) * a.dtype.itemsize
                       for a in (w1p, b1p, w2p, b2p, w3p, b3p))
    cost = pl.CostEstimate(
        flops=2 * B * (D * H2p + H2p * Hp + Hp * C),
        transcendentals=B * (H2p + Hp),
        bytes_accessed=B * D * x.dtype.itemsize + B * C * 4 + weight_bytes,
    )

    yp = pl.pallas_call(
        output_net_kernel,
        out_shape=jax.ShapeDtypeStruct((Bp, C), jnp.float32),
        grid=grid,
        in_specs=[
            pl.BlockSpec((TB, D), lambda i: (i, 0)),   # x: unpadded, batch-tiled
            resident(w1p), resident(b1p),
            resident(w2p), resident(b2p),
            resident(w3p), resident(b3p),
        ],
        out_specs=pl.BlockSpec((TB, C), lambda i: (i, 0)),  # narrow output
        compiler_params=pltpu.CompilerParams(
            dimension_semantics=("parallel",)),
        cost_estimate=cost,
    )(xp, w1p, b1p, w2p, b2p, w3p, b3p)

    return yp if Bp == B else yp[:B]


def init_params(key, input_size, hidden_dim, out_class_1):
    """Deterministic synthetic init matching nn.Linear shapes (stored transposed)."""
    k1, k2, k3, k4, k5, k6 = jax.random.split(key, 6)

    def lin(kw, kb, fan_in, fan_out):
        bound = 1.0 / jnp.sqrt(fan_in)
        w = jax.random.uniform(kw, (fan_in, fan_out), jnp.float32, -bound, bound)
        b = jax.random.uniform(kb, (1, fan_out), jnp.float32, -bound, bound)
        return w, b

    w1, b1 = lin(k1, k2, input_size, hidden_dim * 2)
    w2, b2 = lin(k3, k4, hidden_dim * 2, hidden_dim)
    w3, b3 = lin(k5, k6, hidden_dim, out_class_1)
    return {"w1": w1, "b1": b1, "w2": w2, "b2": b2, "w3": w3, "b3": b3}


if __name__ == "__main__":
    # Shapes consistent with the module:
    #   input_size=64, args.hidden_layer=32, args.out_class_1=4, batch=8
    input_size, hidden_dim, out_class_1, batch = 64, 32, 4, 8

    key = jax.random.PRNGKey(0)
    kx, kp = jax.random.split(key)
    x = jax.random.normal(kx, (batch, input_size), jnp.float32)
    params = init_params(kp, input_size, hidden_dim, out_class_1)

    # Pure-JAX f32 reference of the same forward semantics.
    h1 = jnp.tanh(x @ params["w1"] + params["b1"])
    h2 = jnp.tanh(h1 @ params["w2"] + params["b2"])
    y_ref = h2 @ params["w3"] + params["b3"]

    # f32 matmul path (exact vs reference; safe default / v5e path).
    prep_f32 = prepare_params(params)                      # one-time weight prep
    y = jax.block_until_ready(output_net_1(x, prep_f32))
    assert y.shape == (batch, out_class_1)
    assert jnp.allclose(y, y_ref, atol=1e-5, rtol=1e-5)

    # bf16-MXU path (v6e / v7x recommendation): bf16 weights (pre-cast once)
    # and bf16 x at the HBM boundary; f32 accumulate / bias / tanh in-kernel.
    prep_bf16 = prepare_params(params, matmul_dtype=jnp.bfloat16)
    y_bf16 = jax.block_until_ready(
        output_net_1(x.astype(jnp.bfloat16), prep_bf16))
    assert y_bf16.shape == (batch, out_class_1)
    assert float(jnp.max(jnp.abs(y_bf16 - y_ref))) < 7.5e-2

    print("KERNEL_OK")
</pallas_src>

<mosaic_0001>
module attributes {stable_mosaic.version = 11 : i64} {
  func.func @output_net_kernel(%arg0: i32, %arg1: memref<8x64xf32, #tpu.memory_space<vmem>>, %arg2: memref<64x128xf32, #tpu.memory_space<vmem>>, %arg3: memref<1x128xf32, #tpu.memory_space<vmem>>, %arg4: memref<128x128xf32, #tpu.memory_space<vmem>>, %arg5: memref<1x128xf32, #tpu.memory_space<vmem>>, %arg6: memref<128x4xf32, #tpu.memory_space<vmem>>, %arg7: memref<1x4xf32, #tpu.memory_space<vmem>>, %arg8: memref<8x4xf32, #tpu.memory_space<vmem>>) attributes {dimension_semantics = [#tpu.dimension_semantics<parallel>], iteration_bounds = array<i64: 1>, scalar_prefetch = 0 : i64, scratch_operands = 0 : i64, tpu.core_type = #tpu.core_type<tc>, window_params = [{transform_indices = @transform_0, window_bounds = array<i64: 8, 64>}, {pipeline_mode = #tpu.pipeline_mode<synchronous>, transform_indices = @transform_1, window_bounds = array<i64: 64, 128>}, {pipeline_mode = #tpu.pipeline_mode<synchronous>, transform_indices = @transform_2, window_bounds = array<i64: 1, 128>}, {pipeline_mode = #tpu.pipeline_mode<synchronous>, transform_indices = @transform_3, window_bounds = array<i64: 128, 128>}, {pipeline_mode = #tpu.pipeline_mode<synchronous>, transform_indices = @transform_4, window_bounds = array<i64: 1, 128>}, {pipeline_mode = #tpu.pipeline_mode<synchronous>, transform_indices = @transform_5, window_bounds = array<i64: 128, 4>}, {pipeline_mode = #tpu.pipeline_mode<synchronous>, transform_indices = @transform_6, window_bounds = array<i64: 1, 4>}, {transform_indices = @transform_7, window_bounds = array<i64: 8, 4>}]} {
    %c0 = arith.constant 0 : index
    %c0_0 = arith.constant 0 : index
    %0 = vector.load %arg1[%c0, %c0_0] : memref<8x64xf32, #tpu.memory_space<vmem>>, vector<8x64xf32>
    %c0_1 = arith.constant 0 : index
    %c0_2 = arith.constant 0 : index
    %1 = vector.load %arg2[%c0_1, %c0_2] : memref<64x128xf32, #tpu.memory_space<vmem>>, vector<64x128xf32>
    %cst = arith.constant dense<0.000000e+00> : vector<8x128xf32>
    %2 = tpu.matmul %0, %1, %cst {dimension_numbers = #tpu.dot_dimension_numbers<[1], [0], [0], [1], [0, 0, 1, 1], [], []>} : vector<8x64xf32>, vector<64x128xf32>, vector<8x128xf32> -> vector<8x128xf32>
    %c0_3 = arith.constant 0 : index
    %c0_4 = arith.constant 0 : index
    %3 = vector.load %arg3[%c0_3, %c0_4] : memref<1x128xf32, #tpu.memory_space<vmem>>, vector<1x128xf32>
    %4 = vector.broadcast %3 : vector<1x128xf32> to vector<8x128xf32>
    %5 = arith.addf %2, %4 : vector<8x128xf32>
    %6 = math.tanh %5 : vector<8x128xf32>
    %c0_5 = arith.constant 0 : index
    %c0_6 = arith.constant 0 : index
    %7 = vector.load %arg4[%c0_5, %c0_6] : memref<128x128xf32, #tpu.memory_space<vmem>>, vector<128x128xf32>
    %cst_7 = arith.constant dense<0.000000e+00> : vector<8x128xf32>
    %8 = tpu.matmul %6, %7, %cst_7 {dimension_numbers = #tpu.dot_dimension_numbers<[1], [0], [0], [1], [0, 0, 1, 1], [], []>} : vector<8x128xf32>, vector<128x128xf32>, vector<8x128xf32> -> vector<8x128xf32>
    %c0_8 = arith.constant 0 : index
    %c0_9 = arith.constant 0 : index
    %9 = vector.load %arg5[%c0_8, %c0_9] : memref<1x128xf32, #tpu.memory_space<vmem>>, vector<1x128xf32>
    %10 = vector.broadcast %9 : vector<1x128xf32> to vector<8x128xf32>
    %11 = arith.addf %8, %10 : vector<8x128xf32>
    %12 = math.tanh %11 : vector<8x128xf32>
    %c0_10 = arith.constant 0 : index
    %c0_11 = arith.constant 0 : index
    %13 = vector.load %arg6[%c0_10, %c0_11] : memref<128x4xf32, #tpu.memory_space<vmem>>, vector<128x4xf32>
    %cst_12 = arith.constant dense<0.000000e+00> : vector<8x4xf32>
    %14 = tpu.matmul %12, %13, %cst_12 {dimension_numbers = #tpu.dot_dimension_numbers<[1], [0], [0], [1], [0, 0, 1, 1], [], []>} : vector<8x128xf32>, vector<128x4xf32>, vector<8x4xf32> -> vector<8x4xf32>
    %c0_13 = arith.constant 0 : index
    %c0_14 = arith.constant 0 : index
    %15 = vector.load %arg7[%c0_13, %c0_14] : memref<1x4xf32, #tpu.memory_space<vmem>>, vector<1x4xf32>
    %16 = vector.broadcast %15 : vector<1x4xf32> to vector<8x4xf32>
    %17 = arith.addf %14, %16 : vector<8x4xf32>
    %c0_15 = arith.constant 0 : index
    %c0_16 = arith.constant 0 : index
    %18 = vector.load %arg8[%c0_15, %c0_16] : memref<8x4xf32, #tpu.memory_space<vmem>>, vector<8x4xf32>
    tpu.vector_store %arg8[%c0_15, %c0_16], %17 {strides = array<i32>} : memref<8x4xf32, #tpu.memory_space<vmem>>, vector<8x4xf32>,
    return
  }
  func.func @transform_0(%arg0: i32) -> (i32, i32) {
    %c0_i32 = arith.constant 0 : i32
    %c0_i32_0 = arith.constant 0 : i32
    return %arg0, %c0_i32 : i32, i32
  }
  func.func @transform_1(%arg0: i32) -> (i32, i32) {
    %c0_i32 = arith.constant 0 : i32
    %c0_i32_0 = arith.constant 0 : i32
    %c0_i32_1 = arith.constant 0 : i32
    return %c0_i32, %c0_i32_0 : i32, i32
  }
  func.func @transform_2(%arg0: i32) -> (i32, i32) {
    %c0_i32 = arith.constant 0 : i32
    %c0_i32_0 = arith.constant 0 : i32
    %c0_i32_1 = arith.constant 0 : i32
    return %c0_i32, %c0_i32_0 : i32, i32
  }
  func.func @transform_3(%arg0: i32) -> (i32, i32) {
    %c0_i32 = arith.constant 0 : i32
    %c0_i32_0 = arith.constant 0 : i32
    %c0_i32_1 = arith.constant 0 : i32
    return %c0_i32, %c0_i32_0 : i32, i32
  }
  func.func @transform_4(%arg0: i32) -> (i32, i32) {
    %c0_i32 = arith.constant 0 : i32
    %c0_i32_0 = arith.constant 0 : i32
    %c0_i32_1 = arith.constant 0 : i32
    return %c0_i32, %c0_i32_0 : i32, i32
  }
  func.func @transform_5(%arg0: i32) -> (i32, i32) {
    %c0_i32 = arith.constant 0 : i32
    %c0_i32_0 = arith.constant 0 : i32
    %c0_i32_1 = arith.constant 0 : i32
    return %c0_i32, %c0_i32_0 : i32, i32
  }
  func.func @transform_6(%arg0: i32) -> (i32, i32) {
    %c0_i32 = arith.constant 0 : i32
    %c0_i32_0 = arith.constant 0 : i32
    %c0_i32_1 = arith.constant 0 : i32
    return %c0_i32, %c0_i32_0 : i32, i32
  }
  func.func @transform_7(%arg0: i32) -> (i32, i32) {
    %c0_i32 = arith.constant 0 : i32
    %c0_i32_0 = arith.constant 0 : i32
    return %arg0, %c0_i32 : i32, i32
  }
}

</mosaic_0001>

<llo_original>
// kernel: tpu_custom_call.1
$region0: #{tpu_custom_call.1}
  #allocation0 [shape = 'u32[]', space=smem, size = 0x4, offset = 0x4, fixed_abs, tag = 'smem constant byte address 0x4 - core index']
  #allocation1 [shape = 'u32[144,128]{1,0:T(1,128)}', space=vmem, size = 0x12000, scoped, tag = 'internal scratch']
  %s0 = inlined_call_operand.vmem [shape: f32[8,64], index: 0, kind: input, shape index: {}]
  %s1 = inlined_call_operand.hbm [shape: f32[64,128], index: 1, kind: input, shape index: {}]
  %s2 = inlined_call_operand.vmem [shape: f32[1,128], index: 2, kind: input, shape index: {}]
  %s3 = inlined_call_operand.vmem [shape: f32[128,128], index: 3, kind: input, shape index: {}]
  %s4 = inlined_call_operand.vmem [shape: f32[1,128], index: 4, kind: input, shape index: {}]
  %s5 = inlined_call_operand.vmem [shape: f32[128,4], index: 5, kind: input, shape index: {}]
  %s6 = inlined_call_operand.vmem [shape: f32[1,4], index: 6, kind: input, shape index: {}]
  %s7 = inlined_call_operand.vmem [shape: f32[8,4], index: 7, kind: output, shape index: {}]
  %s8 = sld [smem:[#allocation0]]
  $region42: #{tpu_custom_call.1} parent=0
    _
  %s10 = ssub.s32 1, %s8
  %s11 = scalar_select 0, %s10, %s8
  $region1: #{tpu_custom_call.1} parent=0
    #allocation2 [shape = 'u8[32768]{0}', space=vmem, size = 0x8000, scoped, tag = 'input window, operand 1, single buffered']
    #allocation3 [shape = 's32[1]{0}', space=sflag, size = 0x4, scoped, tag = 'scoped memory for tpu_custom_call.1']
    %12 = vsyncpa [#allocation3], 0
    // Predicated region
    $region2: #{tpu_custom_call.1} parent=1 // pred_check
      _
    $region3: #{tpu_custom_call.1} parent=1 // pred_check_branch
      %14 = sbr.rel (0) target = $region5
    $region4: #{tpu_custom_call.1} parent=1 // pred_region
      _
    $region5: #{tpu_custom_call.1} parent=1 // pred_fallthru
      _
    // Predicated region
    $region6: #{tpu_custom_call.1} parent=1 // pred_check
      _
    $region7: #{tpu_custom_call.1} parent=1 // pred_check_branch
      %16 = sbr.rel (0) target = $region9
    $region8: #{tpu_custom_call.1} parent=1 // pred_region
      %s18 = ssub.s32 1024, 1024
      %19 = vsyncadd [#allocation3], %s18
      %s20 = sshll.u32 [#allocation2], 4
      %s21 = int_to_ptr.vmem [resolvable:$true] %s20
      %26 = dma.hbm_to_vmem [thread:$0]  %s1, 1024, %s21, [#allocation3], 128, 128, 8
    $region9: #{tpu_custom_call.1} parent=1 // pred_fallthru
      _
    // Predicated region
    $region10: #{tpu_custom_call.1} parent=1 // pred_check
      _
    $region11: #{tpu_custom_call.1} parent=1 // pred_check_branch
      %28 = sbr.rel (0) target = $region13
    $region12: #{tpu_custom_call.1} parent=1 // pred_region
      _
    $region13: #{tpu_custom_call.1} parent=1 // pred_fallthru
      _
    // Predicated region
    $region14: #{tpu_custom_call.1} parent=1 // pred_check
      _
    $region15: #{tpu_custom_call.1} parent=1 // pred_check_branch
      %30 = sbr.rel (0) target = $region17
    $region16: #{tpu_custom_call.1} parent=1 // pred_region
      _
    $region17: #{tpu_custom_call.1} parent=1 // pred_fallthru
      _
    // Predicated region
    $region18: #{tpu_custom_call.1} parent=1 // pred_check
      _
    $region19: #{tpu_custom_call.1} parent=1 // pred_check_branch
      %32 = sbr.rel (0) target = $region21
    $region20: #{tpu_custom_call.1} parent=1 // pred_region
      _
    $region21: #{tpu_custom_call.1} parent=1 // pred_fallthru
      _
    // Predicated region
    $region22: #{tpu_custom_call.1} parent=1 // pred_check
      _
    $region23: #{tpu_custom_call.1} parent=1 // pred_check_branch
      %34 = sbr.rel (0) target = $region25
    $region24: #{tpu_custom_call.1} parent=1 // pred_region
      _
    $region25: #{tpu_custom_call.1} parent=1 // pred_fallthru
      _
    // Predicated region
    $region26: #{tpu_custom_call.1} parent=1 // pred_check
      _
    $region27: #{tpu_custom_call.1} parent=1 // pred_check_branch
      %36 = sbr.rel (0) target = $region29
    $region28: #{tpu_custom_call.1} parent=1 // pred_region
      _
    $region29: #{tpu_custom_call.1} parent=1 // pred_fallthru
      _
    // Predicated region
    $region30: #{tpu_custom_call.1} parent=1 // pred_check
      _
    $region31: #{tpu_custom_call.1} parent=1 // pred_check_branch
      %38 = sbr.rel (0) target = $region33
    $region32: #{tpu_custom_call.1} parent=1 // pred_region
      %39 = dma.done [#allocation3], 1024
    $region33: #{tpu_custom_call.1} parent=1 // pred_fallthru
      _
    %v40 = vld [vmem:[%s0] sm:$0xff]
    %v41 = vld [vmem:[#allocation2] sm:$0xff]
    %v42 = vld [vmem:[#allocation2 + $0x8] sm:$0xff]
    %v43 = vld [vmem:[#allocation2 + $0x10] sm:$0xff]
    %v44 = vld [vmem:[#allocation2 + $0x18] sm:$0xff]
    %v45 = vld [vmem:[#allocation2 + $0x20] sm:$0xff]
    %v46 = vld [vmem:[#allocation2 + $0x28] sm:$0xff]
    %v47 = vld [vmem:[#allocation2 + $0x30] sm:$0xff]
    %v48 = vld [vmem:[#allocation2 + $0x38] sm:$0xff]
    %v49 = vld [vmem:[%s2] sm:$0x1]
    %v51 = vlaneseq
    %v52 = vshrl.u32 %v51, 7
    %v53 = vsub.s32 0, %v52
    %v54 = vrot.slane %v49, %v53
    %vm56 = vcmask 523264
    %v58 = vsel %vm56, %v40, 0
    %60 = vmatprep.subr.mxu0 0.0
    %61 = vmatpush1.msra.mxu0 %v41
    %62 = vmatprep.subr.mxu0 0.0
    %63 = vmatpush1.msra.mxu0 %v42
    %64 = vmatprep.subr.mxu0 0.0
    %65 = vmatpush1.msra.mxu0 %v43
    %66 = vmatprep.subr.mxu0 0.0
    %67 = vmatpush1.msra.mxu0 %v44
    %68 = vmatprep.subr.mxu0 0.0
    %69 = vmatpush1.msra.mxu0 %v45
    %70 = vmatprep.subr.mxu0 0.0
    %71 = vmatpush1.msra.mxu0 %v46
    %72 = vmatprep.subr.mxu0 0.0
    %73 = vmatpush1.msra.mxu0 %v47
    %74 = vmatprep.subr.mxu0 0.0
    %75 = vmatpush1.msra.mxu0 %v48
    %76 = vmatprep.subr.mxu0 0.0
    %77 = vmatpush1.msra.mxu0 0.0
    %78 = vmatprep.subr.mxu0 0.0
    %79 = vmatpush1.msra.mxu0 0.0
    %80 = vmatprep.subr.mxu0 0.0
    %81 = vmatpush1.msra.mxu0 0.0
    %82 = vmatprep.subr.mxu0 0.0
    %83 = vmatpush1.msra.mxu0 0.0
    %84 = vmatprep.subr.mxu0 0.0
    %85 = vmatpush1.msra.mxu0 0.0
    %86 = vmatprep.subr.mxu0 0.0
    %87 = vmatpush1.msra.mxu0 0.0
    %88 = vmatprep.subr.mxu0 0.0
    %89 = vmatpush1.msra.mxu0 0.0
    %90 = vmatprep.subr.mxu0 0.0
    %91 = vmatpush1.msra.mxu0 0.0
    %92 = vmatprep.subr.mxu0 0.0
    %93 = vmatpush1.msra.mxu0 0.0
    %94 = vmatprep.subr.mxu0 0.0
    %95 = vmatpush1.msra.mxu0 0.0
    %96 = vmatprep.subr.mxu0 0.0
    %97 = vmatpush1.msra.mxu0 0.0
    %98 = vmatprep.subr.mxu0 0.0
    %99 = vmatpush1.msra.mxu0 0.0
    %100 = vmatprep.subr.mxu0 0.0
    %101 = vmatpush1.msra.mxu0 0.0
    %102 = vmatprep.subr.mxu0 0.0
    %103 = vmatpush1.msra.mxu0 0.0
    %104 = vmatprep.subr.mxu0 0.0
    %105 = vmatpush1.msra.mxu0 0.0
    %106 = vmatprep.subr.mxu0 0.0
    %107 = vmatpush1.msra.mxu0 0.0
    %108 = vmatprep.subr.mxu0 0.0
    %109 = vmatpush1.msra.mxu0 0.0
    %110 = vmatprep.subr.mxu0 0.0
    %111 = vmatpush1.msra.mxu0 0.0
    %112 = vmatprep.subr.mxu0 0.0
    %113 = vmatpush1.msra.mxu0 0.0
    %114 = vmatprep.subr.mxu0 0.0
    %115 = vmatpush1.msra.mxu0 0.0
    %116 = vmatprep.subr.mxu0 0.0
    %117 = vmatpush1.msra.mxu0 0.0
    %118 = vmatprep.subr.mxu0 0.0
    %119 = vmatpush1.msra.mxu0 0.0
    %120 = vmatprep.subr.mxu0 0.0
    %121 = vmatpush1.msra.mxu0 0.0
    %122 = vmatprep.subr.mxu0 0.0
    %123 = vmatpush1.msra.mxu0 0.0
    %124 = vmatprep.mubr.f32.mxu0 0.0
    %125 = vmatmul.mubr.f32.gmra.mrb[0].mxu0 %v58
    %v126 = vpop.f32.mrb[0].mxu0
    %v127 = vadd.f32 %v54, %v126
    %v128 = vpop.f32.mrb[0].mxu0
    %129 = vdwg.mxu0
    %v130 = vtanh.pop %v127
    %v131 = vld [vmem:[%s3] sm:$0xff]
    %v132 = vld [vmem:[%s3 + $0x8] sm:$0xff]
    %v133 = vld [vmem:[%s3 + $0x10] sm:$0xff]
    %v134 = vld [vmem:[%s3 + $0x18] sm:$0xff]
    %v135 = vld [vmem:[%s3 + $0x20] sm:$0xff]
    %v136 = vld [vmem:[%s3 + $0x28] sm:$0xff]
    %v137 = vld [vmem:[%s3 + $0x30] sm:$0xff]
    %v138 = vld [vmem:[%s3 + $0x38] sm:$0xff]
    %v139 = vld [vmem:[%s3 + $0x40] sm:$0xff]
    %v140 = vld [vmem:[%s3 + $0x48] sm:$0xff]
    %v141 = vld [vmem:[%s3 + $0x50] sm:$0xff]
    %v142 = vld [vmem:[%s3 + $0x58] sm:$0xff]
    %v143 = vld [vmem:[%s3 + $0x60] sm:$0xff]
    %v144 = vld [vmem:[%s3 + $0x68] sm:$0xff]
    %v145 = vld [vmem:[%s3 + $0x70] sm:$0xff]
    %v146 = vld [vmem:[%s3 + $0x78] sm:$0xff]
    %v147 = vld [vmem:[%s4] sm:$0x1]
    %v149 = vlaneseq
    %v150 = vshrl.u32 %v149, 7
    %v151 = vsub.s32 0, %v150
    %v152 = vrot.slane %v147, %v151
    %154 = vmatprep.subr.mxu0 0.0
    %155 = vmatpush1.msra.mxu0 %v131
    %156 = vmatprep.subr.mxu0 0.0
    %157 = vmatpush1.msra.mxu0 %v132
    %158 = vmatprep.subr.mxu0 0.0
    %159 = vmatpush1.msra.mxu0 %v133
    %160 = vmatprep.subr.mxu0 0.0
    %161 = vmatpush1.msra.mxu0 %v134
    %162 = vmatprep.subr.mxu0 0.0
    %163 = vmatpush1.msra.mxu0 %v135
    %164 = vmatprep.subr.mxu0 0.0
    %165 = vmatpush1.msra.mxu0 %v136
    %166 = vmatprep.subr.mxu0 0.0
    %167 = vmatpush1.msra.mxu0 %v137
    %168 = vmatprep.subr.mxu0 0.0
    %169 = vmatpush1.msra.mxu0 %v138
    %170 = vmatprep.subr.mxu0 0.0
    %171 = vmatpush1.msra.mxu0 %v139
    %172 = vmatprep.subr.mxu0 0.0
    %173 = vmatpush1.msra.mxu0 %v140
    %174 = vmatprep.subr.mxu0 0.0
    %175 = vmatpush1.msra.mxu0 %v141
    %176 = vmatprep.subr.mxu0 0.0
    %177 = vmatpush1.msra.mxu0 %v142
    %178 = vmatprep.subr.mxu0 0.0
    %179 = vmatpush1.msra.mxu0 %v143
    %180 = vmatprep.subr.mxu0 0.0
    %181 = vmatpush1.msra.mxu0 %v144
    %182 = vmatprep.subr.mxu0 0.0
    %183 = vmatpush1.msra.mxu0 %v145
    %184 = vmatprep.subr.mxu0 0.0
    %185 = vmatpush1.msra.mxu0 %v146
    %186 = vmatprep.subr.mxu0 0.0
    %187 = vmatpush1.msra.mxu0 0.0
    %188 = vmatprep.subr.mxu0 0.0
    %189 = vmatpush1.msra.mxu0 0.0
    %190 = vmatprep.subr.mxu0 0.0
    %191 = vmatpush1.msra.mxu0 0.0
    %192 = vmatprep.subr.mxu0 0.0
    %193 = vmatpush1.msra.mxu0 0.0
    %194 = vmatprep.subr.mxu0 0.0
    %195 = vmatpush1.msra.mxu0 0.0
    %196 = vmatprep.subr.mxu0 0.0
    %197 = vmatpush1.msra.mxu0 0.0
    %198 = vmatprep.subr.mxu0 0.0
    %199 = vmatpush1.msra.mxu0 0.0
    %200 = vmatprep.subr.mxu0 0.0
    %201 = vmatpush1.msra.mxu0 0.0
    %202 = vmatprep.subr.mxu0 0.0
    %203 = vmatpush1.msra.mxu0 0.0
    %204 = vmatprep.subr.mxu0 0.0
    %205 = vmatpush1.msra.mxu0 0.0
    %206 = vmatprep.subr.mxu0 0.0
    %207 = vmatpush1.msra.mxu0 0.0
    %208 = vmatprep.subr.mxu0 0.0
    %209 = vmatpush1.msra.mxu0 0.0
    %210 = vmatprep.subr.mxu0 0.0
    %211 = vmatpush1.msra.mxu0 0.0
    %212 = vmatprep.subr.mxu0 0.0
    %213 = vmatpush1.msra.mxu0 0.0
    %214 = vmatprep.subr.mxu0 0.0
    %215 = vmatpush1.msra.mxu0 0.0
    %216 = vmatprep.subr.mxu0 0.0
    %217 = vmatpush1.msra.mxu0 0.0
    %218 = vmatprep.mubr.f32.mxu0 0.0
    %219 = vmatmul.mubr.f32.gmra.mrb[0].mxu0 %v130
    %v220 = vpop.f32.mrb[0].mxu0
    %v221 = vadd.f32 %v152, %v220
    %v222 = vpop.f32.mrb[0].mxu0
    %223 = vdwg.mxu0
    %v224 = vtanh.pop %v221
    %v225 = vld [vmem:[%s5] sm:$0xff]
    %v226 = vld [vmem:[%s5 + $0x8] sm:$0xff]
    %v227 = vld [vmem:[%s5 + $0x10] sm:$0xff]
    %v228 = vld [vmem:[%s5 + $0x18] sm:$0xff]
    %v229 = vld [vmem:[%s5 + $0x20] sm:$0xff]
    %v230 = vld [vmem:[%s5 + $0x28] sm:$0xff]
    %v231 = vld [vmem:[%s5 + $0x30] sm:$0xff]
    %v232 = vld [vmem:[%s5 + $0x38] sm:$0xff]
    %v233 = vld [vmem:[%s5 + $0x40] sm:$0xff]
    %v234 = vld [vmem:[%s5 + $0x48] sm:$0xff]
    %v235 = vld [vmem:[%s5 + $0x50] sm:$0xff]
    %v236 = vld [vmem:[%s5 + $0x58] sm:$0xff]
    %v237 = vld [vmem:[%s5 + $0x60] sm:$0xff]
    %v238 = vld [vmem:[%s5 + $0x68] sm:$0xff]
    %v239 = vld [vmem:[%s5 + $0x70] sm:$0xff]
    %v240 = vld [vmem:[%s5 + $0x78] sm:$0xff]
    %v241 = vld [vmem:[%s6] sm:$0x1]
    %v243 = vlaneseq
    %v244 = vshrl.u32 %v243, 7
    %v245 = vsub.s32 0, %v244
    %v246 = vrot.slane %v241, %v245
    %248 = vmatprep.subr.mxu0 0.0
    %249 = vmatpush1.msra.mxu0 %v225
    %250 = vmatprep.subr.mxu0 0.0
    %251 = vmatpush1.msra.mxu0 %v226
    %252 = vmatprep.subr.mxu0 0.0
    %253 = vmatpush1.msra.mxu0 %v227
    %254 = vmatprep.subr.mxu0 0.0
    %255 = vmatpush1.msra.mxu0 %v228
    %256 = vmatprep.subr.mxu0 0.0
    %257 = vmatpush1.msra.mxu0 %v229
    %258 = vmatprep.subr.mxu0 0.0
    %259 = vmatpush1.msra.mxu0 %v230
    %260 = vmatprep.subr.mxu0 0.0
    %261 = vmatpush1.msra.mxu0 %v231
    %262 = vmatprep.subr.mxu0 0.0
    %263 = vmatpush1.msra.mxu0 %v232
    %264 = vmatprep.subr.mxu0 0.0
    %265 = vmatpush1.msra.mxu0 %v233
    %266 = vmatprep.subr.mxu0 0.0
    %267 = vmatpush1.msra.mxu0 %v234
    %268 = vmatprep.subr.mxu0 0.0
    %269 = vmatpush1.msra.mxu0 %v235
    %270 = vmatprep.subr.mxu0 0.0
    %271 = vmatpush1.msra.mxu0 %v236
    %272 = vmatprep.subr.mxu0 0.0
    %273 = vmatpush1.msra.mxu0 %v237
    %274 = vmatprep.subr.mxu0 0.0
    %275 = vmatpush1.msra.mxu0 %v238
    %276 = vmatprep.subr.mxu0 0.0
    %277 = vmatpush1.msra.mxu0 %v239
    %278 = vmatprep.subr.mxu0 0.0
    %279 = vmatpush1.msra.mxu0 %v240
    %280 = vmatprep.subr.mxu0 0.0
    %281 = vmatpush1.msra.mxu0 0.0
    %282 = vmatprep.subr.mxu0 0.0
    %283 = vmatpush1.msra.mxu0 0.0
    %284 = vmatprep.subr.mxu0 0.0
    %285 = vmatpush1.msra.mxu0 0.0
    %286 = vmatprep.subr.mxu0 0.0
    %287 = vmatpush1.msra.mxu0 0.0
    %288 = vmatprep.subr.mxu0 0.0
    %289 = vmatpush1.msra.mxu0 0.0
    %290 = vmatprep.subr.mxu0 0.0
    %291 = vmatpush1.msra.mxu0 0.0
    %292 = vmatprep.subr.mxu0 0.0
    %293 = vmatpush1.msra.mxu0 0.0
    %294 = vmatprep.subr.mxu0 0.0
    %295 = vmatpush1.msra.mxu0 0.0
    %296 = vmatprep.subr.mxu0 0.0
    %297 = vmatpush1.msra.mxu0 0.0
    %298 = vmatprep.subr.mxu0 0.0
    %299 = vmatpush1.msra.mxu0 0.0
    %300 = vmatprep.subr.mxu0 0.0
    %301 = vmatpush1.msra.mxu0 0.0
    %302 = vmatprep.subr.mxu0 0.0
    %303 = vmatpush1.msra.mxu0 0.0
    %304 = vmatprep.subr.mxu0 0.0
    %305 = vmatpush1.msra.mxu0 0.0
    %306 = vmatprep.subr.mxu0 0.0
    %307 = vmatpush1.msra.mxu0 0.0
    %308 = vmatprep.subr.mxu0 0.0
    %309 = vmatpush1.msra.mxu0 0.0
    %310 = vmatprep.subr.mxu0 0.0
    %311 = vmatpush1.msra.mxu0 0.0
    %312 = vmatprep.mubr.f32.mxu0 0.0
    %313 = vmatmul.mubr.f32.gmra.mrb[0].mxu0 %v224
    %v314 = vpop.f32.mrb[0].mxu0
    %v315 = vadd.f32 %v246, %v314
    %v316 = vpop.f32.mrb[0].mxu0
    %317 = vdwg.mxu0
    %vm318 = vcmask 31744
    %319 = vst.msk [vmem:[%s7] sm:$0xff] %vm318, %v315
    // Predicated region
    $region34: #{tpu_custom_call.1} parent=1 // pred_check
      _
    $region35: #{tpu_custom_call.1} parent=1 // pred_check_branch
      %321 = sbr.rel (0) target = $region37
    $region36: #{tpu_custom_call.1} parent=1 // pred_region
      _
    $region37: #{tpu_custom_call.1} parent=1 // pred_fallthru
      _
    // Predicated region
    $region38: #{tpu_custom_call.1} parent=1 // pred_check
      _
    $region39: #{tpu_custom_call.1} parent=1 // pred_check_branch
      %323 = sbr.rel (0) target = $region41
    $region40: #{tpu_custom_call.1} parent=1 // pred_region
      _
    $region41: #{tpu_custom_call.1} parent=1 // pred_fallthru
      _
    %324 = vsyncpa [#allocation3], 1

</llo_original>
